<compile_context>
chip_gen: v7x
topology: tpu7x:2x2x1
jax: 0.10.0
libtpu: 0.0.40
codegen_flags: <defaults>
</compile_context>

<pallas_src>
import functools

import jax
import jax.numpy as jnp
from jax import lax
from jax.experimental import pallas as pl
from jax.experimental.pallas import tpu as pltpu


def _round_up(x, m):
    return (x + m - 1) // m * m


def _conv1d_s1_kernel(x_hbm, w_ref, *rest, K, c_in, dilation, t_tile, win, n_t,
                      has_bias):
    """stride==1: manual halo-window DMA + fused im2col MXU contraction.

    x_hbm : (N, C_in, t_x)    raw HBM ref (memory_space=pl.ANY)
    w_ref : (C_out, K*C_in)   lane-dense fused weight
    b_ref : (C_out, 1)        only when has_bias
    o_ref : (1, C_out, TT)
    xwin  : (2, C_in, win)    double-buffered halo window (VMEM scratch)
    slab  : (K*C_in, TT)      im2col slab (VMEM scratch)
    sem   : DMA semaphores (2,)
    """
    if has_bias:
        b_ref, o_ref, xwin, slab, sem = rest
    else:
        o_ref, xwin, slab, sem = rest

    n = pl.program_id(0)
    t = pl.program_id(1)

    def start_fetch(tile_idx, slot):
        start = tile_idx * t_tile
        if not isinstance(start, int):
            start = pl.multiple_of(start, 128)        # TT is a multiple of 128
        pltpu.make_async_copy(
            x_hbm.at[n, :, pl.ds(start, win)], xwin.at[slot], sem.at[slot]
        ).start()

    # Prime the double buffer at the first time tile of each batch element.
    # Prefetches never cross an `n` boundary, so megacore-sharding over N is
    # safe and no DMA is ever left in flight at the end of a core's chunk.
    @pl.when(t == 0)
    def _():
        start_fetch(0, 0)
        if n_t > 1:
            start_fetch(1, 1)

    slot = t % 2
    # Wait for the current tile's window (only shape/semaphore matter here).
    pltpu.make_async_copy(
        x_hbm.at[n, :, pl.ds(0, win)], xwin.at[slot], sem.at[slot]).wait()

    # Prefetch the next tile of the SAME batch element into the other slot.
    @pl.when((t >= 1) & (t + 1 < n_t))
    def _():
        start_fetch(t + 1, 1 - slot)

    # Build the (K*C_in, TT) im2col slab from the aligned window with small
    # static lane shifts, then ONE MXU contraction of depth K*C_in.
    # TODO(synk): the k*dilation lane shifts could be done with pltpu.roll on
    # the XLU instead of shifted loads if the vld slots ever saturate.
    for k in range(K):
        off = k * dilation
        slab[k * c_in:(k + 1) * c_in, :] = xwin[slot, :, pl.ds(off, t_tile)]

    acc = jnp.dot(w_ref[...], slab[...], preferred_element_type=jnp.float32)
    if has_bias:
        acc = acc + b_ref[...]
    o_ref[0] = acc.astype(o_ref.dtype)


def _conv1d_phase_kernel(x_ref, w_ref, *rest, has_bias):
    """stride>1: dilation phases pre-decimated in the wrapper -> one fused dot.

    x_ref : (1, K*C_in, TT)   stacked phases (auto-pipelined BlockSpec)
    w_ref : (C_out, K*C_in)
    """
    if has_bias:
        b_ref, o_ref = rest
    else:
        (o_ref,) = rest
    acc = jnp.dot(w_ref[...], x_ref[0], preferred_element_type=jnp.float32)
    if has_bias:
        acc = acc + b_ref[...]
    o_ref[0] = acc.astype(o_ref.dtype)


class ConvNorm:
    """JAX/Pallas port of tacotron ConvNorm (Conv1d + xavier_uniform init)."""

    def __init__(self, in_channels, out_channels, kernel_size=1, stride=1,
                 padding=None, dilation=1, bias=True, w_init_gain='linear',
                 compute_dtype=jnp.bfloat16, time_tile=512,
                 key=jax.random.PRNGKey(0)):
        if padding is None:
            assert kernel_size % 2 == 1
            padding = int(dilation * (kernel_size - 1) / 2)
        self.in_channels = in_channels
        self.out_channels = out_channels
        self.kernel_size = kernel_size
        self.stride = stride
        self.padding = padding
        self.dilation = dilation
        self.use_bias = bias
        self.compute_dtype = compute_dtype
        self.time_tile = _round_up(time_tile, 128)

        # xavier_uniform_ with calculate_gain(w_init_gain); 'linear' -> gain = 1.0
        gain = {'linear': 1.0, 'relu': 2.0 ** 0.5, 'tanh': 5.0 / 3.0}.get(w_init_gain, 1.0)
        fan_in = in_channels * kernel_size
        fan_out = out_channels * kernel_size
        bound = gain * (6.0 / (fan_in + fan_out)) ** 0.5
        wkey, bkey = jax.random.split(key)
        # Stored as (K, C_out, C_in); fused to lane-dense (C_out, K*C_in) in __call__.
        self.weight = jax.random.uniform(
            wkey, (kernel_size, out_channels, in_channels),
            minval=-bound, maxval=bound, dtype=jnp.float32).astype(compute_dtype)
        if bias:
            bbound = 1.0 / (fan_in ** 0.5)  # PyTorch Conv1d default bias init
            self.bias = jax.random.uniform(
                bkey, (out_channels, 1), minval=-bbound, maxval=bbound, dtype=jnp.float32)
        else:
            self.bias = jnp.zeros((out_channels, 1), jnp.float32)

    def _fused_weight(self, c_in_pad):
        K, c_out, c_in = self.weight.shape
        w = self.weight
        if c_in_pad != c_in:
            # Zero-padded input channels contribute exactly zero.
            w = jnp.pad(w, ((0, 0), (0, 0), (0, c_in_pad - c_in)))
        # (K, C_out, C_in_pad) -> (C_out, K*C_in_pad); row k*C_in_pad + c of the
        # im2col slab multiplies column k*C_in_pad + c of this matrix.
        return jnp.transpose(w, (1, 0, 2)).reshape(c_out, K * c_in_pad)

    def __call__(self, signal):
        # signal: (N, C_in, T)
        N, c_in, T = signal.shape
        assert c_in == self.in_channels
        K, d, s, p = self.kernel_size, self.dilation, self.stride, self.padding
        c_out = self.out_channels
        dt = self.compute_dtype
        isz = jnp.dtype(dt).itemsize
        osz = jnp.dtype(signal.dtype).itemsize

        t_out = (T + 2 * p - d * (K - 1) - 1) // s + 1
        assert t_out > 0, "output length must be positive"

        # Lane-dense time tile (multiple of 128); output padded up, sliced after.
        TT = min(self.time_tile, _round_up(t_out, 128))
        t_out_pad = _round_up(t_out, TT)
        n_t = t_out_pad // TT

        operands, in_specs = [], []
        if s == 1:
            # Pad channels to the sublane-packing granule so slab stores are aligned.
            pack = 8 * max(1, 4 // isz)          # f32 -> 8 rows, bf16 -> 16 rows
            c_in_p = _round_up(c_in, pack)
            w2 = self._fused_weight(c_in_p)

            # Halo time tiles: window [t*TT, t*TT + win) of the padded input,
            # manually double-buffer-DMA'd -> VMEM bounded independent of T.
            halo = d * (K - 1)
            win = _round_up(TT + halo, 128)
            t_x = max((n_t - 1) * TT + win, T + p)
            # TODO(synk): jnp.pad still materializes a padded copy of x in HBM;
            # the zero pad could be folded into edge-tile masked DMAs instead.
            xp = jnp.pad(signal,
                         ((0, 0), (0, c_in_p - c_in), (p, t_x - T - p))).astype(dt)
            operands.append(xp)
            in_specs.append(pl.BlockSpec(memory_space=pl.ANY))

            kernel = functools.partial(
                _conv1d_s1_kernel, K=K, c_in=c_in_p, dilation=d, t_tile=TT,
                win=win, n_t=n_t, has_bias=self.use_bias)
            scratch = [pltpu.VMEM((2, c_in_p, win), dt),        # halo window (x2)
                       pltpu.VMEM((K * c_in_p, TT), dt),        # im2col slab
                       pltpu.SemaphoreType.DMA((2,))]
            vmem_bytes = (2 * c_in_p * win * isz
                          + K * c_in_p * TT * isz)
            # Prefetches never cross `n` -> megacore over N is safe; `t` stays
            # sequential for the manual DMA pipeline.
            dim_sem = ("parallel", "arbitrary")
        else:
            # TODO(synk): decimate inside the kernel (strided DMA windows) to
            # avoid materializing the K dilation phases in HBM.
            w2 = self._fused_weight(c_in)
            need = (t_out_pad - 1) * s + (K - 1) * d + 1
            xp = jnp.pad(signal, ((0, 0), (0, 0), (p, max(0, need - (T + p)))))
            phases = [lax.slice_in_dim(xp, k * d, k * d + s * (t_out_pad - 1) + 1,
                                       stride=s, axis=2)
                      for k in range(K)]
            x_in = jnp.concatenate(phases, axis=1).astype(dt)   # (N, K*C_in, t_out_pad)
            operands.append(x_in)
            in_specs.append(
                pl.BlockSpec((1, K * c_in, TT), lambda n, t: (n, 0, t)))
            kernel = functools.partial(_conv1d_phase_kernel, has_bias=self.use_bias)
            scratch = []
            vmem_bytes = 2 * K * c_in * TT * isz
            dim_sem = ("parallel", "parallel")

        kc = w2.shape[1]
        operands.append(w2)
        # TODO(synk): weight/bias block index is constant across the grid;
        # pipeline_mode=pl.Buffered(1) would drop their second VMEM buffer.
        in_specs.append(pl.BlockSpec((c_out, kc), lambda n, t: (0, 0)))
        if self.use_bias:
            operands.append(self.bias)
            in_specs.append(pl.BlockSpec((c_out, 1), lambda n, t: (0, 0)))

        # Real footprint + headroom instead of blindly claiming all of VMEM
        # (v7x has only 64 MiB per TC; v6e/v5e have 128 MiB).
        vmem_bytes += (2 * c_out * _round_up(kc, 128) * isz     # weight (dbl-buffered)
                       + 2 * _round_up(c_out, 8) * TT * osz     # output (dbl-buffered)
                       + _round_up(c_out, 8) * TT * 4           # f32 dot result
                       + 2 * _round_up(c_out, 8) * 128 * 4)     # bias
        vmem_limit = int(min(max(vmem_bytes + 8 * 1024 * 1024, 32 * 1024 * 1024),
                             100 * 1024 * 1024))

        out = pl.pallas_call(
            kernel,
            out_shape=jax.ShapeDtypeStruct((N, c_out, t_out_pad), signal.dtype),
            grid_spec=pltpu.PrefetchScalarGridSpec(
                num_scalar_prefetch=0,
                grid=(N, n_t),
                in_specs=in_specs,
                out_specs=pl.BlockSpec((1, c_out, TT), lambda n, t: (n, 0, t)),
                scratch_shapes=scratch,
            ),
            compiler_params=pltpu.CompilerParams(
                dimension_semantics=dim_sem,
                vmem_limit_bytes=vmem_limit,
            ),
        )(*operands)
        return out[:, :, :t_out]


def _reference_conv1d(x, w_koi, b, stride, padding, dilation):
    # pure-JAX reference (lax conv); weight is stored (K, C_out, C_in)
    w = jnp.transpose(w_koi.astype(jnp.float32), (1, 2, 0))    # -> (C_out, C_in, K)
    out = jax.lax.conv_general_dilated(
        x, w, window_strides=(stride,), padding=[(padding, padding)],
        rhs_dilation=(dilation,),
        dimension_numbers=('NCH', 'OIH', 'NCH'))
    return out + b[None, :, :]


if __name__ == "__main__":
    key = jax.random.PRNGKey(0)
    xkey, xkey2, p1, p2, p3 = jax.random.split(key, 5)

    N, C_IN, C_OUT, T, K = 2, 4, 6, 16, 3
    x = jax.random.normal(xkey, (N, C_IN, T), dtype=jnp.float32)

    # 1) f32 compute path, single time tile (strict check vs lax.conv).
    conv_f32 = ConvNorm(C_IN, C_OUT, kernel_size=K, stride=1, dilation=1, bias=True,
                        w_init_gain='linear', compute_dtype=jnp.float32, key=p1)
    y = jax.block_until_ready(conv_f32(x))
    y_ref = _reference_conv1d(x, conv_f32.weight, conv_f32.bias,
                              stride=1, padding=conv_f32.padding, dilation=1)
    assert y.shape == y_ref.shape, (y.shape, y_ref.shape)
    assert jnp.allclose(y, y_ref, atol=1e-5, rtol=1e-5), float(jnp.abs(y - y_ref).max())

    # 2) default bf16-operand / f32-accumulate path (looser tolerance).
    conv_bf16 = ConvNorm(C_IN, C_OUT, kernel_size=K, stride=1, dilation=1, bias=True,
                         w_init_gain='relu', key=p1)
    yb = jax.block_until_ready(conv_bf16(x))
    yb_ref = _reference_conv1d(x, conv_bf16.weight, conv_bf16.bias,
                               stride=1, padding=conv_bf16.padding, dilation=1)
    assert yb.shape == yb_ref.shape, (yb.shape, yb_ref.shape)
    assert jnp.allclose(yb, yb_ref, atol=5e-2, rtol=5e-2), float(jnp.abs(yb - yb_ref).max())

    # 3) strided / dilated / no-bias path (fused phase contraction).
    conv_sd = ConvNorm(C_IN, C_OUT, kernel_size=K, stride=2, padding=2, dilation=2,
                       bias=False, compute_dtype=jnp.float32, key=p2)
    ys = jax.block_until_ready(conv_sd(x))
    ys_ref = _reference_conv1d(x, conv_sd.weight, conv_sd.bias,
                               stride=2, padding=2, dilation=2)
    assert ys.shape == ys_ref.shape, (ys.shape, ys_ref.shape)
    assert jnp.allclose(ys, ys_ref, atol=1e-5, rtol=1e-5), float(jnp.abs(ys - ys_ref).max())

    # 4) multi-time-tile path: exercises the double-buffered halo DMA pipeline
    #    (priming, prefetch, slot rotation) across several grid steps.
    T_LONG = 280
    xl = jax.random.normal(xkey2, (N, C_IN, T_LONG), dtype=jnp.float32)
    conv_mt = ConvNorm(C_IN, C_OUT, kernel_size=K, stride=1, dilation=1, bias=True,
                       compute_dtype=jnp.float32, time_tile=128, key=p3)
    ym = jax.block_until_ready(conv_mt(xl))
    ym_ref = _reference_conv1d(xl, conv_mt.weight, conv_mt.bias,
                               stride=1, padding=conv_mt.padding, dilation=1)
    assert ym.shape == ym_ref.shape, (ym.shape, ym_ref.shape)
    assert jnp.allclose(ym, ym_ref, atol=1e-5, rtol=1e-5), float(jnp.abs(ym - ym_ref).max())

    print("KERNEL_OK")
</pallas_src>

<mosaic_0001>
module attributes {stable_mosaic.version = 11 : i64} {
  func.func @_conv1d_s1_kernel(%arg0: i32, %arg1: i32, %arg2: memref<2x8x256xf32, #tpu.memory_space<any>>, %arg3: memref<6x24xf32, #tpu.memory_space<vmem>>, %arg4: memref<6x1xf32, #tpu.memory_space<vmem>>, %arg5: memref<1x6x128xf32, #tpu.memory_space<vmem>>, %arg6: memref<2x8x256xf32, #tpu.memory_space<vmem>>, %arg7: memref<24x128xf32, #tpu.memory_space<vmem>>, %arg8: memref<2x!tpu.dma_semaphore, #tpu.memory_space<semaphore_mem>>) attributes {dimension_semantics = [#tpu.dimension_semantics<parallel>, #tpu.dimension_semantics<arbitrary>], iteration_bounds = array<i64: 2, 1>, scalar_prefetch = 0 : i64, scratch_operands = 3 : i64, tpu.core_type = #tpu.core_type<tc>, window_params = [{}, {pipeline_mode = #tpu.pipeline_mode<synchronous>, transform_indices = @transform_1, window_bounds = array<i64: 6, 24>}, {pipeline_mode = #tpu.pipeline_mode<synchronous>, transform_indices = @transform_2, window_bounds = array<i64: 6, 1>}, {transform_indices = @transform_3, window_bounds = array<i64: 1, 6, 128>}]} {
    %c0_i32 = arith.constant 0 : i32
    %0 = arith.cmpi eq, %arg1, %c0_i32 : i32
    %1 = arith.extui %0 : i1 to i32
    %c0_i32_0 = arith.constant 0 : i32
    %2 = arith.cmpi ne, %1, %c0_i32_0 : i32
    scf.if %2 {
      %c0_i32_29 = arith.constant 0 : i32
      %c0_i32_30 = arith.constant 0 : i32
      %c0_i32_31 = arith.constant 0 : i32
      %c0_i32_32 = arith.constant 0 : i32
      %46 = tpu.memref_slice %arg2[%arg0, %c0_i32_31, %c0_i32_32] : memref<2x8x256xf32, #tpu.memory_space<any>> -> memref<1x8x256xf32, #tpu.memory_space<any>>
      %47 = tpu.memref_squeeze %46 : memref<1x8x256xf32, #tpu.memory_space<any>> -> memref<8x256xf32, #tpu.memory_space<any>>
      %c0_i32_33 = arith.constant 0 : i32
      %c0_i32_34 = arith.constant 0 : i32
      %48 = tpu.memref_slice %arg6[%c0_i32_29, %c0_i32_33, %c0_i32_34] : memref<2x8x256xf32, #tpu.memory_space<vmem>> -> memref<1x8x256xf32, #tpu.memory_space<vmem>>
      %49 = tpu.memref_squeeze %48 : memref<1x8x256xf32, #tpu.memory_space<vmem>> -> memref<8x256xf32, #tpu.memory_space<vmem>>
      %50 = tpu.memref_slice %arg8[%c0_i32_30] : memref<2x!tpu.dma_semaphore, #tpu.memory_space<semaphore_mem>> -> memref<1x!tpu.dma_semaphore, #tpu.memory_space<semaphore_mem>>
      %51 = tpu.memref_squeeze %50 : memref<1x!tpu.dma_semaphore, #tpu.memory_space<semaphore_mem>> -> memref<!tpu.dma_semaphore, #tpu.memory_space<semaphore_mem>>
      tpu.enqueue_dma source(%47 : memref<8x256xf32, #tpu.memory_space<any>>) target(%49 : memref<8x256xf32, #tpu.memory_space<vmem>>) target_semaphore(%51 : memref<!tpu.dma_semaphore, #tpu.memory_space<semaphore_mem>>)
    } else {
    }
    %c2_i32 = arith.constant 2 : i32
    %c0_i32_1 = arith.constant 0 : i32
    %3 = arith.cmpi eq, %c2_i32, %c0_i32_1 : i32
    %c1_i32 = arith.constant 1 : i32
    %4 = arith.select %3, %c1_i32, %c2_i32 : i32
    %5 = arith.remsi %arg1, %4 : i32
    %c0_i32_2 = arith.constant 0 : i32
    %6 = arith.cmpi ne, %5, %c0_i32_2 : i32
    %c0_i32_3 = arith.constant 0 : i32
    %7 = arith.cmpi slt, %5, %c0_i32_3 : i32
    %c0_i32_4 = arith.constant 0 : i32
    %8 = arith.cmpi slt, %4, %c0_i32_4 : i32
    %9 = arith.xori %7, %8 : i1
    %10 = arith.andi %9, %6 : i1
    %11 = arith.addi %5, %4 : i32
    %12 = arith.select %10, %11, %5 : i32
    %c0_i32_5 = arith.constant 0 : i32
    %c0_i32_6 = arith.constant 0 : i32
    %13 = tpu.memref_slice %arg2[%arg0, %c0_i32_5, %c0_i32_6] : memref<2x8x256xf32, #tpu.memory_space<any>> -> memref<1x8x256xf32, #tpu.memory_space<any>>
    %14 = tpu.memref_squeeze %13 : memref<1x8x256xf32, #tpu.memory_space<any>> -> memref<8x256xf32, #tpu.memory_space<any>>
    %c0_i32_7 = arith.constant 0 : i32
    %c0_i32_8 = arith.constant 0 : i32
    %15 = tpu.memref_slice %arg6[%12, %c0_i32_7, %c0_i32_8] : memref<2x8x256xf32, #tpu.memory_space<vmem>> -> memref<1x8x256xf32, #tpu.memory_space<vmem>>
    %16 = tpu.memref_squeeze %15 : memref<1x8x256xf32, #tpu.memory_space<vmem>> -> memref<8x256xf32, #tpu.memory_space<vmem>>
    %17 = tpu.memref_slice %arg8[%12] : memref<2x!tpu.dma_semaphore, #tpu.memory_space<semaphore_mem>> -> memref<1x!tpu.dma_semaphore, #tpu.memory_space<semaphore_mem>>
    %18 = tpu.memref_squeeze %17 : memref<1x!tpu.dma_semaphore, #tpu.memory_space<semaphore_mem>> -> memref<!tpu.dma_semaphore, #tpu.memory_space<semaphore_mem>>
    tpu.wait_dma2 semaphore(%18 : memref<!tpu.dma_semaphore, #tpu.memory_space<semaphore_mem>>) src(%14 : memref<8x256xf32, #tpu.memory_space<any>>) dst(%16 : memref<8x256xf32, #tpu.memory_space<vmem>>)
    %c1_i32_9 = arith.constant 1 : i32
    %19 = arith.cmpi sge, %arg1, %c1_i32_9 : i32
    %c1_i32_10 = arith.constant 1 : i32
    %20 = arith.addi %arg1, %c1_i32_10 : i32
    %c1_i32_11 = arith.constant 1 : i32
    %21 = arith.cmpi slt, %20, %c1_i32_11 : i32
    %22 = arith.andi %19, %21 : i1
    %23 = arith.extui %22 : i1 to i32
    %c0_i32_12 = arith.constant 0 : i32
    %24 = arith.cmpi ne, %23, %c0_i32_12 : i32
    scf.if %24 {
      %c1_i32_29 = arith.constant 1 : i32
      %46 = arith.addi %arg1, %c1_i32_29 : i32
      %c1_i32_30 = arith.constant 1 : i32
      %47 = arith.subi %c1_i32_30, %12 : i32
      %c128_i32 = arith.constant 128 : i32
      %48 = arith.muli %46, %c128_i32 : i32
      %49 = tpu.assume_multiple %48, 128 : i32
      %c0_i32_31 = arith.constant 0 : i32
      %50 = tpu.memref_slice %arg2[%arg0, %c0_i32_31, %49] : memref<2x8x256xf32, #tpu.memory_space<any>> -> memref<1x8x256xf32, #tpu.memory_space<any>>
      %51 = tpu.memref_squeeze %50 : memref<1x8x256xf32, #tpu.memory_space<any>> -> memref<8x256xf32, #tpu.memory_space<any>>
      %c0_i32_32 = arith.constant 0 : i32
      %c0_i32_33 = arith.constant 0 : i32
      %52 = tpu.memref_slice %arg6[%47, %c0_i32_32, %c0_i32_33] : memref<2x8x256xf32, #tpu.memory_space<vmem>> -> memref<1x8x256xf32, #tpu.memory_space<vmem>>
      %53 = tpu.memref_squeeze %52 : memref<1x8x256xf32, #tpu.memory_space<vmem>> -> memref<8x256xf32, #tpu.memory_space<vmem>>
      %54 = tpu.memref_slice %arg8[%47] : memref<2x!tpu.dma_semaphore, #tpu.memory_space<semaphore_mem>> -> memref<1x!tpu.dma_semaphore, #tpu.memory_space<semaphore_mem>>
      %55 = tpu.memref_squeeze %54 : memref<1x!tpu.dma_semaphore, #tpu.memory_space<semaphore_mem>> -> memref<!tpu.dma_semaphore, #tpu.memory_space<semaphore_mem>>
      tpu.enqueue_dma source(%51 : memref<8x256xf32, #tpu.memory_space<any>>) target(%53 : memref<8x256xf32, #tpu.memory_space<vmem>>) target_semaphore(%55 : memref<!tpu.dma_semaphore, #tpu.memory_space<semaphore_mem>>)
    } else {
    }
    %25 = arith.index_cast %12 : i32 to index
    %c0 = arith.constant 0 : index
    %c0_13 = arith.constant 0 : index
    %26 = vector.load %arg6[%25, %c0, %c0_13] : memref<2x8x256xf32, #tpu.memory_space<vmem>>, vector<1x8x128xf32>
    %27 = vector.shape_cast %26 : vector<1x8x128xf32> to vector<8x128xf32>
    %c0_14 = arith.constant 0 : index
    %c0_15 = arith.constant 0 : index
    %28 = vector.load %arg7[%c0_14, %c0_15] : memref<24x128xf32, #tpu.memory_space<vmem>>, vector<8x128xf32>
    tpu.vector_store %arg7[%c0_14, %c0_15], %27 {strides = array<i32>} : memref<24x128xf32, #tpu.memory_space<vmem>>, vector<8x128xf32>,
    %29 = arith.index_cast %12 : i32 to index
    %c0_16 = arith.constant 0 : index
    %c1 = arith.constant 1 : index
    %30 = vector.load %arg6[%29, %c0_16, %c1] : memref<2x8x256xf32, #tpu.memory_space<vmem>>, vector<1x8x128xf32>
    %31 = vector.shape_cast %30 : vector<1x8x128xf32> to vector<8x128xf32>
    %c8 = arith.constant 8 : index
    %c0_17 = arith.constant 0 : index
    %32 = vector.load %arg7[%c8, %c0_17] : memref<24x128xf32, #tpu.memory_space<vmem>>, vector<8x128xf32>
    tpu.vector_store %arg7[%c8, %c0_17], %31 {strides = array<i32>} : memref<24x128xf32, #tpu.memory_space<vmem>>, vector<8x128xf32>,
    %33 = arith.index_cast %12 : i32 to index
    %c0_18 = arith.constant 0 : index
    %c2 = arith.constant 2 : index
    %34 = vector.load %arg6[%33, %c0_18, %c2] : memref<2x8x256xf32, #tpu.memory_space<vmem>>, vector<1x8x128xf32>
    %35 = vector.shape_cast %34 : vector<1x8x128xf32> to vector<8x128xf32>
    %c16 = arith.constant 16 : index
    %c0_19 = arith.constant 0 : index
    %36 = vector.load %arg7[%c16, %c0_19] : memref<24x128xf32, #tpu.memory_space<vmem>>, vector<8x128xf32>
    tpu.vector_store %arg7[%c16, %c0_19], %35 {strides = array<i32>} : memref<24x128xf32, #tpu.memory_space<vmem>>, vector<8x128xf32>,
    %c0_20 = arith.constant 0 : index
    %c0_21 = arith.constant 0 : index
    %37 = vector.load %arg3[%c0_20, %c0_21] : memref<6x24xf32, #tpu.memory_space<vmem>>, vector<6x24xf32>
    %c0_22 = arith.constant 0 : index
    %c0_23 = arith.constant 0 : index
    %38 = vector.load %arg7[%c0_22, %c0_23] : memref<24x128xf32, #tpu.memory_space<vmem>>, vector<24x128xf32>
    %cst = arith.constant dense<0.000000e+00> : vector<6x128xf32>
    %39 = tpu.matmul %37, %38, %cst {dimension_numbers = #tpu.dot_dimension_numbers<[1], [0], [0], [1], [0, 0, 1, 1], [], []>} : vector<6x24xf32>, vector<24x128xf32>, vector<6x128xf32> -> vector<6x128xf32>
    %c0_24 = arith.constant 0 : index
    %c0_25 = arith.constant 0 : index
    %40 = vector.load %arg4[%c0_24, %c0_25] : memref<6x1xf32, #tpu.memory_space<vmem>>, vector<6x1xf32>
    %41 = vector.broadcast %40 : vector<6x1xf32> to vector<6x128xf32>
    %42 = arith.addf %39, %41 : vector<6x128xf32>
    %c0_26 = arith.constant 0 : index
    %c0_27 = arith.constant 0 : index
    %c0_28 = arith.constant 0 : index
    %43 = vector.load %arg5[%c0_26, %c0_27, %c0_28] : memref<1x6x128xf32, #tpu.memory_space<vmem>>, vector<1x6x128xf32>
    %44 = vector.shape_cast %43 : vector<1x6x128xf32> to vector<6x128xf32>
    %45 = vector.shape_cast %42 : vector<6x128xf32> to vector<1x6x128xf32>
    tpu.vector_store %arg5[%c0_26, %c0_27, %c0_28], %45 {strides = array<i32>} : memref<1x6x128xf32, #tpu.memory_space<vmem>>, vector<1x6x128xf32>,
    return
  }
  func.func @transform_1(%arg0: i32, %arg1: i32) -> (i32, i32) {
    %c0_i32 = arith.constant 0 : i32
    %c0_i32_0 = arith.constant 0 : i32
    %c0_i32_1 = arith.constant 0 : i32
    return %c0_i32, %c0_i32_0 : i32, i32
  }
  func.func @transform_2(%arg0: i32, %arg1: i32) -> (i32, i32) {
    %c0_i32 = arith.constant 0 : i32
    %c0_i32_0 = arith.constant 0 : i32
    %c0_i32_1 = arith.constant 0 : i32
    return %c0_i32, %c0_i32_0 : i32, i32
  }
  func.func @transform_3(%arg0: i32, %arg1: i32) -> (i32, i32, i32) {
    %c0_i32 = arith.constant 0 : i32
    %c0_i32_0 = arith.constant 0 : i32
    return %arg0, %c0_i32, %arg1 : i32, i32, i32
  }
}

</mosaic_0001>

<llo_original>
// kernel: tpu_custom_call.1
$region0: #{tpu_custom_call.1}
  #allocation0 [shape = 'u32[]', space=smem, size = 0x4, offset = 0x4, fixed_abs, tag = 'smem constant byte address 0x4 - core index']
  #allocation1 [shape = 'u32[144,128]{1,0:T(1,128)}', space=vmem, size = 0x12000, scoped, tag = 'internal scratch']
  #allocation2 [shape = 'f32[2,8,256]{2,1,0:T(8,128)}', space=vmem, size = 0x4000, scoped, tag = 'scratch operand']
  #allocation3 [shape = 'f32[24,128]{1,0:T(8,128)}', space=vmem, size = 0x3000, scoped, tag = 'scratch operand']
  #allocation4 [shape = 's32[2]{0}', space=sflag, size = 0x8, scoped, tag = 'scratch operand']
  #allocation5 [shape = 's32[]', space=sflag, size = 0x4, offset = 0, fixed_abs, tag = 'sflag constant byte address 0x0 - dummy sync flag']
  #allocation6 [shape = 's32[]', space=sflag, size = 0x4, offset = 0, fixed_abs, tag = 'sflag constant byte address 0x0 - dummy sync flag']
  #allocation7 [shape = 'u32[]', space=smem, size = 0x4, offset = 0x44, fixed_abs, tag = 'smem constant byte address 0x44 - assertion arg 0']
  #allocation8 [shape = 'u32[]', space=smem, size = 0x4, offset = 0x48, fixed_abs, tag = 'smem constant byte address 0x48 - assertion arg 1']
  #allocation9 [shape = 's32[]', space=sflag, size = 0x4, offset = 0, fixed_abs, tag = 'sflag constant byte address 0x0 - dummy sync flag']
  #allocation10 [shape = 's32[]', space=sflag, size = 0x4, offset = 0, fixed_abs, tag = 'sflag constant byte address 0x0 - dummy sync flag']
  %s0 = inlined_call_operand.hbm [shape: f32[2,8,256], index: 0, kind: input, shape index: {}]
  %s1 = inlined_call_operand.vmem [shape: f32[6,24], index: 1, kind: input, shape index: {}]
  %s2 = inlined_call_operand.vmem [shape: f32[6,1], index: 2, kind: input, shape index: {}]
  %s3 = inlined_call_operand.vmem [shape: f32[2,6,128], index: 3, kind: output, shape index: {}]
  %s4 = sld [smem:[#allocation0]]
  $region57: #{tpu_custom_call.1} parent=0
    _
  %s6 = ssub.s32 1, %s4
  %s7 = scalar_select 0, %s6, %s4
  loop: start=0, step=1, limit=4
  $region2: #{tpu_custom_call.1} parent=0 // loop_pre_header
    _
  $region3: #{tpu_custom_call.1} parent=0 // loop_header
    %s9 = sphi 0, %s13
    %p10 = scmp.ge.s32.totalorder %s9, 4
    %s16 = sphi 0, %s28
    %s17 = sphi 0, %s24
    %s18 = sphi 0, %s16
    %s19 = sphi 0, %s17
    %s20 = sphi 0, %s18
    %s21 = sphi 0, %s19
    %s29 = sphi 0, %s29
    %s31 = sphi 0, %s29
    %s32 = sphi 0, %s31
    %s46 = sphi 0, %s32
    %s50 = sphi 0, %s50
    %s52 = sphi 0, %s50
    %s53 = sphi 0, %s52
    %s67 = sphi 0, %s53
    %s75 = sphi 0, %s77
    %s78 = sphi 0, %s75
    %s79 = sphi 0, %s78
    %s95 = sphi 0, %s79
  $region4: #{tpu_custom_call.1} parent=0 // loop_header_branch
    %12 = sbr.rel (%p10) target = $region8
  $region5: #{tpu_custom_call.1} parent=0 // loop_body
    %s14 = ssub.s32 %s9, 1
    %s15 = ssub.s32 %s9, 2
    %s22 = sadd.s32 1, %s17
    %p23 = scmp.ge.s32.totalorder %s22, 1
    %s24 = scalar_select %p23, 0, %s22
    %s25 = sadd.s32 1, %s16
    %s26 = scalar_select %p23, %s25, %s16
    %p27 = scmp.ge.s32.totalorder %s26, 2
    %s28 = scalar_select %p27, 0, %s26
    %s30 = sadd.s32 %s29, 1
    %p33 = scmp.eq.s32.totalorder %s9, 1
    %p34 = scmp.ne.s32.totalorder %s29, %s31
    %p35 = scmp.eq.s32.totalorder %s9, 0
    %p36 = por %p34, %p35
    %p37 = scmp.ne.s32.totalorder %s29, %s31
    %p38 = scmp.eq.s32.totalorder %s14, 1
    %p39 = por %p37, %p38
    %p40 = scmp.ne.s32.totalorder %s31, %s32
    %p41 = scmp.eq.s32.totalorder %s14, 0
    %p42 = por %p40, %p41
    %p43 = scmp.ne.s32.totalorder %s31, %s32
    %p44 = scmp.eq.s32.totalorder %s15, 1
    %p45 = por %p43, %p44
    %p47 = scmp.ne.s32.totalorder %s32, %s46
    %p48 = scmp.eq.s32.totalorder %s15, 0
    %p49 = por %p47, %p48
    %s51 = sadd.s32 %s50, 1
    %p54 = scmp.eq.s32.totalorder %s9, 1
    %p55 = scmp.ne.s32.totalorder %s50, %s52
    %p56 = scmp.eq.s32.totalorder %s9, 0
    %p57 = por %p55, %p56
    %p58 = scmp.ne.s32.totalorder %s50, %s52
    %p59 = scmp.eq.s32.totalorder %s14, 1
    %p60 = por %p58, %p59
    %p61 = scmp.ne.s32.totalorder %s52, %s53
    %p62 = scmp.eq.s32.totalorder %s14, 0
    %p63 = por %p61, %p62
    %p64 = scmp.ne.s32.totalorder %s52, %s53
    %p65 = scmp.eq.s32.totalorder %s15, 1
    %p66 = por %p64, %p65
    %p68 = scmp.ne.s32.totalorder %s53, %s67
    %p69 = scmp.eq.s32.totalorder %s15, 0
    %p70 = por %p68, %p69
    %s71 = ssub.s32 %s16, %s28
    %s72 = ssub.s32 %s17, %s24
    %s73 = sor.u32 %s71, %s72
    %p74 = scmp.eq.s32.totalorder %s73, 0
    %s76 = sadd.s32 %s75, 1
    %s77 = scalar_select %p74, %s75, %s76
    %p80 = pneg %p74
    %p81 = scmp.eq.s32.totalorder %s9, 1
    %p82 = por %p80, %p81
    %p83 = scmp.ne.s32.totalorder %s75, %s78
    %p84 = scmp.eq.s32.totalorder %s9, 0
    %p85 = por %p83, %p84
    %p86 = scmp.ne.s32.totalorder %s75, %s78
    %p87 = scmp.eq.s32.totalorder %s14, 1
    %p88 = por %p86, %p87
    %p89 = scmp.ne.s32.totalorder %s78, %s79
    %p90 = scmp.eq.s32.totalorder %s14, 0
    %p91 = por %p89, %p90
    %p92 = scmp.ne.s32.totalorder %s78, %s79
    %p93 = scmp.eq.s32.totalorder %s15, 1
    %p94 = por %p92, %p93
    %p96 = scmp.ne.s32.totalorder %s79, %s95
    %p97 = scmp.eq.s32.totalorder %s15, 0
    %p98 = por %p96, %p97
    %p99 = scmp.le.s32.totalorder 1, %s9
    %p100 = scmp.lt.s32.totalorder %s9, 3
    %p101 = pnand %p99, %p100
    %p102 = pneg %p101
    // Predicated region
    $region9: #{tpu_custom_call.1} parent=5 // pred_check
      _
    $region10: #{tpu_custom_call.1} parent=5 // pred_check_branch
      %104 = sbr.rel (%p101) target = $region12
    $region11: #{tpu_custom_call.1} parent=5 // pred_region
      %s105 = ssub.s32 %s9, 1
      // Predicated region
      $region13: #{tpu_custom_call.1} parent=11 // pred_check
        %p106 = pneg %p42
      $region14: #{tpu_custom_call.1} parent=11 // pred_check_branch
        %108 = sbr.rel (%p106) target = $region16
      $region15: #{tpu_custom_call.1} parent=11 // pred_region
        _
      $region16: #{tpu_custom_call.1} parent=11 // pred_fallthru
        _
      // Predicated region
      $region17: #{tpu_custom_call.1} parent=11 // pred_check
        %p109 = pneg %p63
      $region18: #{tpu_custom_call.1} parent=11 // pred_check_branch
        %111 = sbr.rel (%p109) target = $region20
      $region19: #{tpu_custom_call.1} parent=11 // pred_region
        _
      $region20: #{tpu_custom_call.1} parent=11 // pred_fallthru
        _
    $region12: #{tpu_custom_call.1} parent=5 // pred_fallthru
      _
    %p112 = scmp.lt.s32.totalorder %s9, 2
    // Predicated region
    $region21: #{tpu_custom_call.1} parent=5 // pred_check
      %p113 = pneg %p112
    $region22: #{tpu_custom_call.1} parent=5 // pred_check_branch
      %115 = sbr.rel (%p113) target = $region24
    $region23: #{tpu_custom_call.1} parent=5 // pred_region
      _
    $region24: #{tpu_custom_call.1} parent=5 // pred_fallthru
      _
    %p116 = scmp.le.s32.totalorder 1, %s9
    %p117 = scmp.lt.s32.totalorder %s9, 3
    %p118 = pnand %p116, %p117
    %p119 = pneg %p118
    // Predicated region
    $region25: #{tpu_custom_call.1} parent=5 // pred_check
      _
    $region26: #{tpu_custom_call.1} parent=5 // pred_check_branch
      %121 = sbr.rel (%p118) target = $region28
    $region27: #{tpu_custom_call.1} parent=5 // pred_region
      %s122 = ssub.s32 %s9, 1
      %p123 = pneg %p42
      %p124 = pneg %p39
      %p125 = pneg %p63
      %p126 = pneg %p60
      %p127 = pneg %p91
      %p128 = pneg %p88
      %p129 = scmp.lt.s32.totalorder %s18, 1
      %s130 = scalar_select %p129, %s18, 1
      %p131 = scmp.lt.s32.totalorder %s19, 0
      %s132 = scalar_select %p131, %s19, 0
      %s133 = sadd.s32 %s132, %s130
      %s134 = smul.addr %s133, 8
      %s135 = scalar_lea.vmem %s3, %s134
      %p136 = scmp.lt.s32.totalorder %s18, 1
      %s137 = scalar_select %p136, %s18, 1
      %p138 = scmp.lt.s32.totalorder %s19, 0
      %s139 = scalar_select %p138, %s19, 0
      %s140 = sadd.s32 %s139, %s137
      %s141 = smul.addr %s140, 8
      %s142 = scalar_lea.vmem %s3, %s141
      %p143 = scmp.eq.s32.totalorder %s19, 0
      // Predicated region
      $region29: #{tpu_custom_call.1} parent=27 // pred_check
        %p144 = pneg %p143
      $region30: #{tpu_custom_call.1} parent=27 // pred_check_branch
        %146 = sbr.rel (%p144) target = $region32
      $region31: #{tpu_custom_call.1} parent=27 // pred_region
        %s147 = smul.u32 %s18, 2
        %s148 = smul.addr %s147, 128
        %s149 = scalar_lea.hbm %s0, %s148
        // Predicated region
        $region33: #{tpu_custom_call.1} parent=31 // pred_check
          _
        $region34: #{tpu_custom_call.1} parent=31 // pred_check_branch
          %151 = sbr.rel target = $region36
        $region35: #{tpu_custom_call.1} parent=31 // pred_region
          %152 = sst [smem:[#allocation7]] [#allocation6]
          %153 = sst [smem:[#allocation8]] [#allocation5]
        $region36: #{tpu_custom_call.1} parent=31 // pred_fallthru
          _
        %155 = shalt.err (0)
        %s157 = sshll.u32 [#allocation2], 4
        %s158 = int_to_ptr.vmem [resolvable:$true] %s157
        %160 = dma.hbm_to_vmem [thread:$0]  %s149, 256, %s158, [#allocation4]
      $region32: #{tpu_custom_call.1} parent=27 // pred_fallthru
        _
      %p161 = scmp.lt.s32.totalorder %s19, 0
      %s162 = ssub.s32 0, %s19
      %s163 = scalar_select %p161, %s162, %s19
      %s164 = sand.u32 %s163, 1
      %s165 = ssub.s32 0, %s164
      %s166 = scalar_select %p161, %s165, %s164
      %p167 = scmp.ne.s32.totalorder %s166, 0
      %p168 = scmp.lt.s32.totalorder %s166, 0
      %p169 = pnand %p168, %p167
      %p170 = pneg %p169
      %s171 = sadd.s32 %s166, 2
      %s172 = scalar_select %p170, %s171, %s166
      %s173 = smul.u32 %s172, 2
      %s174 = smul.addr %s173, 8
      %s175 = scalar_lea.vmem [#allocation2], %s174
      %s176 = scalar_lea.sflag [#allocation4], %s172
      %s177 = smul.u32 8, 1
      %s178 = smul.u32 %s177, 2
      %s179 = sshll.u32 %s178, 4
      %180 = dma.done %s176, %s179
      %p181 = scmp.ge.s32.totalorder %s19, 1
      %s182 = sadd.s32 %s19, 1
      %p183 = scmp.lt.s32.totalorder %s182, 1
      %p184 = pnand %p181, %p183
      %p185 = pneg %p184
      // Predicated region
      $region37: #{tpu_custom_call.1} parent=27 // pred_check
        _
      $region38: #{tpu_custom_call.1} parent=27 // pred_check_branch
        %187 = sbr.rel (%p184) target = $region40
      $region39: #{tpu_custom_call.1} parent=27 // pred_region
        %s188 = ssub.s32 1, %s172
        %s189 = smul.u32 %s182, 128
        %s190 = sshra.s32 %s189, 7
        %s191 = sand.u32 %s189, 127
        %s192 = smul.u32 %s18, 2
        %s193 = sadd.s32 %s190, %s192
        %s194 = smul.addr %s193, 128
        %s195 = scalar_lea.hbm %s0, %s194
        %s196 = smul.u32 %s188, 2
        %s197 = smul.addr %s196, 8
        %s198 = scalar_lea.vmem [#allocation2], %s197
        %s199 = scalar_lea.sflag [#allocation4], %s188
        // Predicated region
        $region41: #{tpu_custom_call.1} parent=39 // pred_check
          _
        $region42: #{tpu_custom_call.1} parent=39 // pred_check_branch
          %201 = sbr.rel target = $region44
        $region43: #{tpu_custom_call.1} parent=39 // pred_region
          %202 = sst [smem:[#allocation7]] [#allocation10]
          %203 = sst [smem:[#allocation8]] [#allocation9]
        $region44: #{tpu_custom_call.1} parent=39 // pred_fallthru
          _
        %205 = shalt.err (0)
        %s207 = sshll.u32 %s198, 4
        %s208 = int_to_ptr.vmem [resolvable:$true] %s207
        %210 = dma.hbm_to_vmem [thread:$0]  %s195, 256, %s208, %s199
      $region40: #{tpu_custom_call.1} parent=27 // pred_fallthru
        _
      %v211 = vld [vmem:[%s175] sm:$0xff]
      %212 = vst [vmem:[#allocation3] sm:$0xff] %v211
      %v213 = vld [vmem:[%s175] sm:$0xff]
      %v214 = vld [vmem:[%s175 + $0x8] sm:$0xff]
      %217 = vrot.lane.b32.xlu0 %v213, 127
      %v218 = vpop.permute.xlu0 %217
      %219 = vrot.lane.b32.xlu0 %v214, 127
      %v220 = vpop.permute.xlu0 %219
      %vm221 = vcmask 1039360
      %v222 = vsel %vm221, %v218, %v220
      %224 = vst [vmem:[#allocation3 + $0x8] sm:$0xff] %v222
      %v225 = vld [vmem:[%s175] sm:$0xff]
      %v226 = vld [vmem:[%s175 + $0x8] sm:$0xff]
      %229 = vrot.lane.b32.xlu0 %v225, 126
      %v230 = vpop.permute.xlu0 %229
      %231 = vrot.lane.b32.xlu0 %v226, 126
      %v232 = vpop.permute.xlu0 %231
      %vm233 = vcmask 1031168
      %v234 = vsel %vm233, %v230, %v232
      %236 = vst [vmem:[#allocation3 + $0x10] sm:$0xff] %v234
      %v237 = vld [vmem:[%s1] sm:$0x3f]
      %v238 = vld [vmem:[#allocation3] sm:$0xff]
      %v239 = vld [vmem:[#allocation3 + $0x8] sm:$0xff]
      %v240 = vld [vmem:[#allocation3 + $0x10] sm:$0xff]
      %v241 = vld [vmem:[%s2] sm:$0x3f]
      %243 = vset.pattern.permute.xlu0 0
      %244 = vperm.xlu0 %243, %v241
      %v245 = vpop.permute.xlu0 %244
      %vm247 = vcmask 195584
      %v249 = vsel %vm247, %v237, 0
      %251 = vmatprep.subr.mxu0 0.0
      %252 = vmatpush1.msra.mxu0 %v238
      %253 = vmatprep.subr.mxu0 0.0
      %254 = vmatpush1.msra.mxu0 %v239
      %255 = vmatprep.subr.mxu0 0.0
      %256 = vmatpush1.msra.mxu0 %v240
      %257 = vmatprep.subr.mxu0 0.0
      %258 = vmatpush1.msra.mxu0 0.0
      %259 = vmatprep.subr.mxu0 0.0
      %260 = vmatpush1.msra.mxu0 0.0
      %261 = vmatprep.subr.mxu0 0.0
      %262 = vmatpush1.msra.mxu0 0.0
      %263 = vmatprep.subr.mxu0 0.0
      %264 = vmatpush1.msra.mxu0 0.0
      %265 = vmatprep.subr.mxu0 0.0
      %266 = vmatpush1.msra.mxu0 0.0
      %267 = vmatprep.subr.mxu0 0.0
      %268 = vmatpush1.msra.mxu0 0.0
      %269 = vmatprep.subr.mxu0 0.0
      %270 = vmatpush1.msra.mxu0 0.0
      %271 = vmatprep.subr.mxu0 0.0
      %272 = vmatpush1.msra.mxu0 0.0
      %273 = vmatprep.subr.mxu0 0.0
      %274 = vmatpush1.msra.mxu0 0.0
      %275 = vmatprep.subr.mxu0 0.0
      %276 = vmatpush1.msra.mxu0 0.0
      %277 = vmatprep.subr.mxu0 0.0
      %278 = vmatpush1.msra.mxu0 0.0
      %279 = vmatprep.subr.mxu0 0.0
      %280 = vmatpush1.msra.mxu0 0.0
      %281 = vmatprep.subr.mxu0 0.0
      %282 = vmatpush1.msra.mxu0 0.0
      %283 = vmatprep.subr.mxu0 0.0
      %284 = vmatpush1.msra.mxu0 0.0
      %285 = vmatprep.subr.mxu0 0.0
      %286 = vmatpush1.msra.mxu0 0.0
      %287 = vmatprep.subr.mxu0 0.0
      %288 = vmatpush1.msra.mxu0 0.0
      %289 = vmatprep.subr.mxu0 0.0
      %290 = vmatpush1.msra.mxu0 0.0
      %291 = vmatprep.subr.mxu0 0.0
      %292 = vmatpush1.msra.mxu0 0.0
      %293 = vmatprep.subr.mxu0 0.0
      %294 = vmatpush1.msra.mxu0 0.0
      %295 = vmatprep.subr.mxu0 0.0
      %296 = vmatpush1.msra.mxu0 0.0
      %297 = vmatprep.subr.mxu0 0.0
      %298 = vmatpush1.msra.mxu0 0.0
      %299 = vmatprep.subr.mxu0 0.0
      %300 = vmatpush1.msra.mxu0 0.0
      %301 = vmatprep.subr.mxu0 0.0
      %302 = vmatpush1.msra.mxu0 0.0
      %303 = vmatprep.subr.mxu0 0.0
      %304 = vmatpush1.msra.mxu0 0.0
      %305 = vmatprep.subr.mxu0 0.0
      %306 = vmatpush1.msra.mxu0 0.0
      %307 = vmatprep.subr.mxu0 0.0
      %308 = vmatpush1.msra.mxu0 0.0
      %309 = vmatprep.subr.mxu0 0.0
      %310 = vmatpush1.msra.mxu0 0.0
      %311 = vmatprep.subr.mxu0 0.0
      %312 = vmatpush1.msra.mxu0 0.0
      %313 = vmatprep.subr.mxu0 0.0
      %314 = vmatpush1.msra.mxu0 0.0
      %315 = vmatprep.mubr.f32.mxu0 0.0
      %316 = vmatmul.mubr.f32.gmra.mrb[0].mxu0 %v249
      %v317 = vpop.f32.mrb[0].mxu0
      %v318 = vadd.f32 %v245, %v317
      %v319 = vpop.f32.mrb[0].mxu0
      %320 = vdwg.mxu0
      %321 = vst [vmem:[%s142] sm:$0x3f] %v318
      %p322 = scmp.lt.s32.totalorder %s18, 1
      %s323 = scalar_select %p322, %s18, 1
      %p324 = scmp.lt.s32.totalorder %s19, 0
      %s325 = scalar_select %p324, %s19, 0
      %s326 = sadd.s32 %s325, %s323
      %s327 = smul.addr %s326, 8
      %s328 = scalar_lea.vmem %s3, %s327
      // Predicated region
      $region45: #{tpu_custom_call.1} parent=27 // pred_check
        %p329 = pneg %p88
      $region46: #{tpu_custom_call.1} parent=27 // pred_check_branch
        %331 = sbr.rel (%p329) target = $region48
      $region47: #{tpu_custom_call.1} parent=27 // pred_region
        _
      $region48: #{tpu_custom_call.1} parent=27 // pred_fallthru
        _
    $region28: #{tpu_custom_call.1} parent=5 // pred_fallthru
      _
    %p332 = scmp.le.s32.totalorder 2, %s9
    // Predicated region
    $region49: #{tpu_custom_call.1} parent=5 // pred_check
      %p333 = pneg %p332
    $region50: #{tpu_custom_call.1} parent=5 // pred_check_branch
      %335 = sbr.rel (%p333) target = $region52
    $region51: #{tpu_custom_call.1} parent=5 // pred_region
      %s336 = ssub.s32 %s9, 2
      // Predicated region
      $region53: #{tpu_custom_call.1} parent=51 // pred_check
        %p337 = pneg %p94
      $region54: #{tpu_custom_call.1} parent=51 // pred_check_branch
        %339 = sbr.rel (%p337) target = $region56
      $region55: #{tpu_custom_call.1} parent=51 // pred_region
        %p340 = scmp.lt.s32.totalorder %s20, 1
        %s341 = scalar_select %p340, %s20, 1
        %p342 = scmp.lt.s32.totalorder %s21, 0
        %s343 = scalar_select %p342, %s21, 0
        %s344 = sadd.s32 %s343, %s341
        %s345 = smul.addr %s344, 8
        %s346 = scalar_lea.vmem %s3, %s345
      $region56: #{tpu_custom_call.1} parent=51 // pred_fallthru
        _
    $region52: #{tpu_custom_call.1} parent=5 // pred_fallthru
      _
  $region6: #{tpu_custom_call.1} parent=0 // loop_footer
    %s13 = sadd.s32 1, %s9
  $region7: #{tpu_custom_call.1} parent=0 // loop_footer_branch
    %8 = sbr.rel target = $region3
  $region8: #{tpu_custom_call.1} parent=0 // loop_exit
    _
  %347 = vsyncmov [#allocation4]
  %s348 = vpop.sfrf %347
  %p349 = scmp.eq.s32.totalorder %s348, 0
  %p350 = pneg %p349
  %352 = shalt.err (%p350)
  %s353 = scalar_lea.sflag [#allocation4], 1
  %354 = vsyncmov %s353
  %s355 = vpop.sfrf %354
  %p356 = scmp.eq.s32.totalorder %s355, 0
  %p357 = pneg %p356
  %359 = shalt.err (%p357)

</llo_original>
